<compile_context>
chip_gen: v5e
topology: v5e:2x2
jax: 0.10.0
libtpu: 0.0.40
codegen_flags: <defaults>
</compile_context>

<pallas_src>
import functools

import jax
import jax.numpy as jnp
from jax.experimental import pallas as pl
from jax.experimental.pallas import tpu as pltpu

LANES = 128
HALO_ROWS = 8            # 8*128 = 1024-sample forward halo  ->  supports order <= 1023
_UNROLL_MAX = 8          # unroll the order loop up to this order


def _shift_flat_m1(v, last_col_mask):
    """Shift by -1 of the row-major flattening of a 2-D (rows,128) block.

    out[r, c]   = v[r, c+1]   for c < 127
    out[r, 127] = v[r+1, 0]   (last row's value wraps to v[0,0]: garbage, see halo notes)
    """
    s = jnp.roll(v, -1, axis=1)          # lane rotate  (XLU)
    w = jnp.roll(s, -1, axis=0)          # sublane rotate (XLU) to fetch next row's col 0
    return jnp.where(last_col_mask, w, s)


def _apf_chain(x0, mod, last_col_mask, a_ref, b_ref, order):
    """Apply `order` steps of y <- mod*(a[i]*y + b[i]*(x - shift(y))); x <- shift(x)."""
    if order <= _UNROLL_MAX:
        x, y = x0, x0
        for i in range(order):
            sy = _shift_flat_m1(y, last_col_mask)
            y = mod * (a_ref[i] * y + b_ref[i] * (x - sy))
            if i + 1 < order:
                x = _shift_flat_m1(x, last_col_mask)
        return y

    def body(i, carry):
        x, y = carry
        sy = _shift_flat_m1(y, last_col_mask)
        y = mod * (a_ref[i] * y + b_ref[i] * (x - sy))
        return _shift_flat_m1(x, last_col_mask), y

    return jax.lax.fori_loop(0, order, body, (x0, x0))[1]


def _apf_kernel(a_ref, b_ref, x_ref, halo_ref, o_ref, *,
                order, length, tile_rows, chunk_rows):
    # a_ref, b_ref: (order,) f32 in SMEM.
    # x_ref:  (tile_rows, 128) tile of the (circularly padded) waveform.
    # halo_ref: first 8 rows of the next tile (circularly), for the last chunk's halo.
    tile = pl.program_id(0)
    win_rows = chunk_rows + HALO_ROWS
    num_chunks = tile_rows // chunk_rows
    inv = 1.0 / float(max(length - 1, 1))        # torch NaNs at length==1; we return finite
    tile_base = tile * (tile_rows * LANES)       # int32 flat offset of this tile

    # Window-invariant index arrays (hoisted out of the chunk loop).
    r_iota = jax.lax.broadcasted_iota(jnp.int32, (win_rows, LANES), 0)
    c_iota = jax.lax.broadcasted_iota(jnp.int32, (win_rows, LANES), 1)
    local_flat = r_iota * LANES + c_iota
    last_col = c_iota == (LANES - 1)

    def process(x_win, base_flat):
        flat = base_flat + local_flat
        # Circular wrap.  A single conditional subtract is sufficient for every position
        # whose modulation can reach a real (< length) output sample (wrapper guarantees
        # padding == 0 or padding >= order, and order <= length).
        flat = jnp.where(flat >= length, flat - length, flat)
        mod = 1.0 + flat.astype(jnp.float32) * inv
        y = _apf_chain(x_win, mod, last_col, a_ref, b_ref, order)
        return y[:chunk_rows, :]

    def chunk_body(j, carry):
        row0 = pl.multiple_of(j * chunk_rows, 8)
        x_win = x_ref[pl.ds(row0, win_rows), :].astype(jnp.float32)
        y = process(x_win, tile_base + row0 * LANES)
        o_ref[pl.ds(row0, chunk_rows), :] = y.astype(o_ref.dtype)
        return carry

    # All chunks whose (chunk + 8-row halo) window lies fully inside this tile.
    if num_chunks > 1:
        jax.lax.fori_loop(0, num_chunks - 1, chunk_body, 0)

    # Last chunk of the tile: its halo rows come from the separately fetched next tile.
    row0 = tile_rows - chunk_rows
    x_win = jnp.concatenate(
        [x_ref[pl.ds(row0, chunk_rows), :], halo_ref[...]], axis=0
    ).astype(jnp.float32)
    y = process(x_win, tile_base + row0 * LANES)
    o_ref[pl.ds(row0, chunk_rows), :] = y.astype(o_ref.dtype)


def _choose_tiling(rows, target_tile_rows, target_chunk_rows):
    """Pick (tile_rows, num_tiles, chunk_rows).

    tile_rows % chunk_rows == 0, chunk_rows % 8 == 0, and num_tiles >= 2 whenever
    rows > 8 so ("parallel",) can shard the grid across both v7x TensorCores.
    """
    def rup(n, m):
        return ((n + m - 1) // m) * m

    tgt_tile = max(8, rup(int(target_tile_rows), 8))
    tgt_chunk = max(8, rup(int(target_chunk_rows), 8))
    if rows <= 8:
        return 8, 1, 8
    tr = min(tgt_tile, rup(-(-rows // 2), 8))        # aim for >= 2 tiles
    if tr >= tgt_chunk:
        ch = tgt_chunk
        tr = rup(tr, ch)
    else:
        ch = tr
    num_tiles = -(-rows // tr)
    return tr, num_tiles, ch


def periodic_all_pass_filter(x, a, b, frequency=None, *, tile_rows=4096, chunk_rows=32):
    """Pallas TPU forward of PeriodicAllPassFilter for a 1-D waveform x of length L.

    `frequency` is accepted but unused: in the torch forward the sin modulation is
    overwritten by `modulation = t_normalized` before it is ever used.
    """
    del frequency
    if x.ndim != 1:
        raise ValueError("expected a 1-D waveform")
    order = int(a.shape[0])
    L = int(x.shape[0])
    if order == 0:
        return jnp.asarray(x, jnp.float32)
    if order > HALO_ROWS * LANES - 1:
        # TODO(synk): orders beyond the 1023-sample halo would need a deeper halo block.
        raise NotImplementedError("order > 1023 not supported by the tiled kernel")
    if order > L:
        # TODO(synk): order > length would need full multi-wrap modular indexing.
        raise NotImplementedError("order > waveform length not supported")

    a32 = jnp.asarray(a, jnp.float32)
    b32 = jnp.asarray(b, jnp.float32)

    rows = -(-L // LANES)
    TR, num_tiles, CH = _choose_tiling(rows, tile_rows, chunk_rows)
    pad = num_tiles * TR * LANES - L
    if 0 < pad < order:
        # Keep every forward dependency of a real sample inside the circular padding,
        # so the (possibly mis-indexed) wrap-around halo of the last tile can never
        # contaminate a real output.
        num_tiles += 1
        pad += TR * LANES
    rows_pad = num_tiles * TR

    if pad:
        reps = -(-pad // L)
        xp = jnp.concatenate([x, jnp.tile(x, reps)[:pad]])   # circular padding: x[q mod L]
    else:
        xp = x
    x2 = xp.reshape(rows_pad, LANES)     # lane-dense (rows, 128) row-major layout

    kernel = functools.partial(_apf_kernel, order=order, length=L,
                               tile_rows=TR, chunk_rows=CH)
    out = pl.pallas_call(
        kernel,
        grid=(num_tiles,),
        in_specs=[
            pl.BlockSpec(memory_space=pltpu.MemorySpace.SMEM),             # a
            pl.BlockSpec(memory_space=pltpu.MemorySpace.SMEM),             # b
            pl.BlockSpec((TR, LANES), lambda i: (i, 0)),                   # waveform tile
            pl.BlockSpec((HALO_ROWS, LANES),                               # circular halo
                         lambda i: (((i + 1) % num_tiles) * (TR // HALO_ROWS), 0)),
        ],
        out_specs=pl.BlockSpec((TR, LANES), lambda i: (i, 0)),
        out_shape=jax.ShapeDtypeStruct((rows_pad, LANES), jnp.float32),
        compiler_params=pltpu.CompilerParams(dimension_semantics=("parallel",)),
    )(a32, b32, x2, x2)
    return out.reshape(-1)[:L]


def _reference(x, a, b):
    """Pure-JAX reference mirroring the torch forward."""
    order = int(a.shape[0])
    L = x.shape[0]
    t = jnp.arange(L, dtype=jnp.float32)
    tn = t / jnp.max(t)
    x = x.astype(jnp.float32)
    y = x
    for i in range(order):
        a_mod = a[i] * (1.0 + tn)
        b_mod = b[i] * (1.0 + tn)
        y = b_mod * x + a_mod * y - b_mod * jnp.roll(y, -1)
        x = jnp.roll(x, -1)
    return y


if __name__ == "__main__":
    key = jax.random.PRNGKey(0)
    # (L, order): exercise multi-tile wrap, the in-tile chunk loop, circular padding,
    # the pad-bump path, and the fori_loop-over-order path.
    configs = [
        (4096, 3),      # 2 tiles, no padding, halo of last tile wraps to tile 0
        (131072, 2),    # 2 tiles x 16 chunks: in-tile register-blocked chunk loop
        (1000, 2),      # not a multiple of 128: circular padding + wrap into the pad
        (640, 1),       # tiny single-tile case
        (4094, 5),      # 0 < pad < order: extra padding tile is added
        (2048, 10),     # order > unroll threshold: fori_loop with dynamic SMEM reads
    ]
    for L, order in configs:
        key, k_a, k_b, k_f, k_x = jax.random.split(key, 5)
        # nn.Parameter(torch.rand(order)) -> uniform[0, 1)
        a = jax.random.uniform(k_a, (order,), dtype=jnp.float32)
        b = jax.random.uniform(k_b, (order,), dtype=jnp.float32)
        frequency = jax.random.uniform(k_f, (order,), dtype=jnp.float32)  # unused by fwd
        x = jax.random.normal(k_x, (L,), dtype=jnp.float32)

        y = jax.block_until_ready(periodic_all_pass_filter(x, a, b, frequency))
        y_ref = _reference(x, a, b)

        assert y.shape == (L,) and y.dtype == jnp.float32
        scale = jnp.maximum(jnp.max(jnp.abs(y_ref)), 1e-6)
        err = float(jnp.max(jnp.abs(y - y_ref)) / scale)
        tol = 1e-3 if order > _UNROLL_MAX else 2e-4
        assert err < tol, f"mismatch vs reference: L={L} order={order} err={err}"

    print("KERNEL_OK")
</pallas_src>

<mosaic_0001>
module attributes {stable_mosaic.version = 11 : i64} {
  func.func @_apf_kernel(%arg0: i32, %arg1: memref<3xf32, #tpu.memory_space<smem>>, %arg2: memref<3xf32, #tpu.memory_space<smem>>, %arg3: memref<16x128xf32, #tpu.memory_space<vmem>>, %arg4: memref<8x128xf32, #tpu.memory_space<vmem>>, %arg5: memref<16x128xf32, #tpu.memory_space<vmem>>) attributes {dimension_semantics = [#tpu.dimension_semantics<parallel>], iteration_bounds = array<i64: 2>, scalar_prefetch = 0 : i64, scratch_operands = 0 : i64, tpu.core_type = #tpu.core_type<tc>, window_params = [{transform_indices = @transform_0, window_bounds = array<i64: 3>}, {transform_indices = @transform_1, window_bounds = array<i64: 3>}, {transform_indices = @transform_2, window_bounds = array<i64: 16, 128>}, {transform_indices = @transform_3, window_bounds = array<i64: 8, 128>}, {transform_indices = @transform_4, window_bounds = array<i64: 16, 128>}]} {
    %c2048_i32 = arith.constant 2048 : i32
    %0 = arith.muli %arg0, %c2048_i32 : i32
    %1 = tpu.iota {dimensions = array<i32: 0>} : vector<24x128xi32>
    %2 = tpu.iota {dimensions = array<i32: 1>} : vector<24x128xi32>
    %c128_i32 = arith.constant 128 : i32
    %3 = vector.broadcast %c128_i32 : i32 to vector<24x128xi32>
    %4 = arith.muli %1, %3 : vector<24x128xi32>
    %5 = arith.addi %4, %2 : vector<24x128xi32>
    %c127_i32 = arith.constant 127 : i32
    %6 = vector.broadcast %c127_i32 : i32 to vector<24x128xi32>
    %7 = arith.cmpi eq, %2, %6 : vector<24x128xi32>
    %c0 = arith.constant 0 : index
    %c0_0 = arith.constant 0 : index
    %8 = vector.load %arg3[%c0, %c0_0] : memref<16x128xf32, #tpu.memory_space<vmem>>, vector<16x128xf32>
    %c0_1 = arith.constant 0 : index
    %c0_2 = arith.constant 0 : index
    %9 = vector.load %arg4[%c0_1, %c0_2] : memref<8x128xf32, #tpu.memory_space<vmem>>, vector<8x128xf32>
    %10 = tpu.concatenate %8, %9 in 0 : vector<16x128xf32>, vector<8x128xf32> -> vector<24x128xf32>
    %c0_i32 = arith.constant 0 : i32
    %11 = arith.addi %0, %c0_i32 : i32
    %12 = vector.broadcast %11 : i32 to vector<24x128xi32>
    %13 = arith.addi %12, %5 : vector<24x128xi32>
    %c4096_i32 = arith.constant 4096 : i32
    %14 = vector.broadcast %c4096_i32 : i32 to vector<24x128xi32>
    %15 = arith.cmpi sge, %13, %14 : vector<24x128xi32>
    %c4096_i32_3 = arith.constant 4096 : i32
    %16 = vector.broadcast %c4096_i32_3 : i32 to vector<24x128xi32>
    %17 = arith.subi %13, %16 : vector<24x128xi32>
    %18 = arith.select %15, %17, %13 : vector<24x128xi1>, vector<24x128xi32>
    %19 = arith.sitofp %18 : vector<24x128xi32> to vector<24x128xf32>
    %cst = arith.constant 2.44200259E-4 : f32
    %20 = vector.broadcast %cst : f32 to vector<24x128xf32>
    %21 = arith.mulf %19, %20 : vector<24x128xf32>
    %cst_4 = arith.constant 1.000000e+00 : f32
    %22 = vector.broadcast %cst_4 : f32 to vector<24x128xf32>
    %23 = arith.addf %22, %21 : vector<24x128xf32>
    %24 = vector.extract_strided_slice %10 {offsets = [0, 1], sizes = [24, 127], strides = [1, 1]} : vector<24x128xf32> to vector<24x127xf32>
    %25 = vector.extract_strided_slice %10 {offsets = [0, 0], sizes = [24, 1], strides = [1, 1]} : vector<24x128xf32> to vector<24x1xf32>
    %26 = tpu.concatenate %24, %25 in 1 : vector<24x127xf32>, vector<24x1xf32> -> vector<24x128xf32>
    %27 = vector.extract_strided_slice %26 {offsets = [1, 0], sizes = [23, 128], strides = [1, 1]} : vector<24x128xf32> to vector<23x128xf32>
    %28 = vector.extract_strided_slice %26 {offsets = [0, 0], sizes = [1, 128], strides = [1, 1]} : vector<24x128xf32> to vector<1x128xf32>
    %29 = tpu.concatenate %27, %28 in 0 : vector<23x128xf32>, vector<1x128xf32> -> vector<24x128xf32>
    %30 = arith.select %7, %29, %26 : vector<24x128xi1>, vector<24x128xf32>
    %c0_5 = arith.constant 0 : index
    %31 = memref.load %arg1[%c0_5] : memref<3xf32, #tpu.memory_space<smem>>
    %32 = vector.broadcast %31 : f32 to vector<24x128xf32>
    %33 = arith.mulf %32, %10 : vector<24x128xf32>
    %c0_6 = arith.constant 0 : index
    %34 = memref.load %arg2[%c0_6] : memref<3xf32, #tpu.memory_space<smem>>
    %35 = arith.subf %10, %30 : vector<24x128xf32>
    %36 = vector.broadcast %34 : f32 to vector<24x128xf32>
    %37 = arith.mulf %36, %35 : vector<24x128xf32>
    %38 = arith.addf %33, %37 : vector<24x128xf32>
    %39 = arith.mulf %23, %38 : vector<24x128xf32>
    %40 = vector.extract_strided_slice %10 {offsets = [0, 1], sizes = [24, 127], strides = [1, 1]} : vector<24x128xf32> to vector<24x127xf32>
    %41 = vector.extract_strided_slice %10 {offsets = [0, 0], sizes = [24, 1], strides = [1, 1]} : vector<24x128xf32> to vector<24x1xf32>
    %42 = tpu.concatenate %40, %41 in 1 : vector<24x127xf32>, vector<24x1xf32> -> vector<24x128xf32>
    %43 = vector.extract_strided_slice %42 {offsets = [1, 0], sizes = [23, 128], strides = [1, 1]} : vector<24x128xf32> to vector<23x128xf32>
    %44 = vector.extract_strided_slice %42 {offsets = [0, 0], sizes = [1, 128], strides = [1, 1]} : vector<24x128xf32> to vector<1x128xf32>
    %45 = tpu.concatenate %43, %44 in 0 : vector<23x128xf32>, vector<1x128xf32> -> vector<24x128xf32>
    %46 = arith.select %7, %45, %42 : vector<24x128xi1>, vector<24x128xf32>
    %47 = vector.extract_strided_slice %39 {offsets = [0, 1], sizes = [24, 127], strides = [1, 1]} : vector<24x128xf32> to vector<24x127xf32>
    %48 = vector.extract_strided_slice %39 {offsets = [0, 0], sizes = [24, 1], strides = [1, 1]} : vector<24x128xf32> to vector<24x1xf32>
    %49 = tpu.concatenate %47, %48 in 1 : vector<24x127xf32>, vector<24x1xf32> -> vector<24x128xf32>
    %50 = vector.extract_strided_slice %49 {offsets = [1, 0], sizes = [23, 128], strides = [1, 1]} : vector<24x128xf32> to vector<23x128xf32>
    %51 = vector.extract_strided_slice %49 {offsets = [0, 0], sizes = [1, 128], strides = [1, 1]} : vector<24x128xf32> to vector<1x128xf32>
    %52 = tpu.concatenate %50, %51 in 0 : vector<23x128xf32>, vector<1x128xf32> -> vector<24x128xf32>
    %53 = arith.select %7, %52, %49 : vector<24x128xi1>, vector<24x128xf32>
    %c1 = arith.constant 1 : index
    %54 = memref.load %arg1[%c1] : memref<3xf32, #tpu.memory_space<smem>>
    %55 = vector.broadcast %54 : f32 to vector<24x128xf32>
    %56 = arith.mulf %55, %39 : vector<24x128xf32>
    %c1_7 = arith.constant 1 : index
    %57 = memref.load %arg2[%c1_7] : memref<3xf32, #tpu.memory_space<smem>>
    %58 = arith.subf %46, %53 : vector<24x128xf32>
    %59 = vector.broadcast %57 : f32 to vector<24x128xf32>
    %60 = arith.mulf %59, %58 : vector<24x128xf32>
    %61 = arith.addf %56, %60 : vector<24x128xf32>
    %62 = arith.mulf %23, %61 : vector<24x128xf32>
    %63 = vector.extract_strided_slice %46 {offsets = [0, 1], sizes = [24, 127], strides = [1, 1]} : vector<24x128xf32> to vector<24x127xf32>
    %64 = vector.extract_strided_slice %46 {offsets = [0, 0], sizes = [24, 1], strides = [1, 1]} : vector<24x128xf32> to vector<24x1xf32>
    %65 = tpu.concatenate %63, %64 in 1 : vector<24x127xf32>, vector<24x1xf32> -> vector<24x128xf32>
    %66 = vector.extract_strided_slice %65 {offsets = [1, 0], sizes = [23, 128], strides = [1, 1]} : vector<24x128xf32> to vector<23x128xf32>
    %67 = vector.extract_strided_slice %65 {offsets = [0, 0], sizes = [1, 128], strides = [1, 1]} : vector<24x128xf32> to vector<1x128xf32>
    %68 = tpu.concatenate %66, %67 in 0 : vector<23x128xf32>, vector<1x128xf32> -> vector<24x128xf32>
    %69 = arith.select %7, %68, %65 : vector<24x128xi1>, vector<24x128xf32>
    %70 = vector.extract_strided_slice %62 {offsets = [0, 1], sizes = [24, 127], strides = [1, 1]} : vector<24x128xf32> to vector<24x127xf32>
    %71 = vector.extract_strided_slice %62 {offsets = [0, 0], sizes = [24, 1], strides = [1, 1]} : vector<24x128xf32> to vector<24x1xf32>
    %72 = tpu.concatenate %70, %71 in 1 : vector<24x127xf32>, vector<24x1xf32> -> vector<24x128xf32>
    %73 = vector.extract_strided_slice %72 {offsets = [1, 0], sizes = [23, 128], strides = [1, 1]} : vector<24x128xf32> to vector<23x128xf32>
    %74 = vector.extract_strided_slice %72 {offsets = [0, 0], sizes = [1, 128], strides = [1, 1]} : vector<24x128xf32> to vector<1x128xf32>
    %75 = tpu.concatenate %73, %74 in 0 : vector<23x128xf32>, vector<1x128xf32> -> vector<24x128xf32>
    %76 = arith.select %7, %75, %72 : vector<24x128xi1>, vector<24x128xf32>
    %c2 = arith.constant 2 : index
    %77 = memref.load %arg1[%c2] : memref<3xf32, #tpu.memory_space<smem>>
    %78 = vector.broadcast %77 : f32 to vector<24x128xf32>
    %79 = arith.mulf %78, %62 : vector<24x128xf32>
    %c2_8 = arith.constant 2 : index
    %80 = memref.load %arg2[%c2_8] : memref<3xf32, #tpu.memory_space<smem>>
    %81 = arith.subf %69, %76 : vector<24x128xf32>
    %82 = vector.broadcast %80 : f32 to vector<24x128xf32>
    %83 = arith.mulf %82, %81 : vector<24x128xf32>
    %84 = arith.addf %79, %83 : vector<24x128xf32>
    %85 = arith.mulf %23, %84 : vector<24x128xf32>
    %86 = vector.extract_strided_slice %85 {offsets = [0, 0], sizes = [16, 128], strides = [1, 1]} : vector<24x128xf32> to vector<16x128xf32>
    %c0_9 = arith.constant 0 : index
    %c0_10 = arith.constant 0 : index
    %87 = vector.load %arg5[%c0_9, %c0_10] : memref<16x128xf32, #tpu.memory_space<vmem>>, vector<16x128xf32>
    tpu.vector_store %arg5[%c0_9, %c0_10], %86 {strides = array<i32>} : memref<16x128xf32, #tpu.memory_space<vmem>>, vector<16x128xf32>,
    return
  }
  func.func @transform_0(%arg0: i32) -> i32 {
    %c0_i32 = arith.constant 0 : i32
    %c0_i32_0 = arith.constant 0 : i32
    return %c0_i32 : i32
  }
  func.func @transform_1(%arg0: i32) -> i32 {
    %c0_i32 = arith.constant 0 : i32
    %c0_i32_0 = arith.constant 0 : i32
    return %c0_i32 : i32
  }
  func.func @transform_2(%arg0: i32) -> (i32, i32) {
    %c0_i32 = arith.constant 0 : i32
    %c0_i32_0 = arith.constant 0 : i32
    return %arg0, %c0_i32 : i32, i32
  }
  func.func @transform_3(%arg0: i32) -> (i32, i32) {
    %c1_i32 = arith.constant 1 : i32
    %0 = arith.addi %arg0, %c1_i32 : i32
    %c2_i32 = arith.constant 2 : i32
    %c0_i32 = arith.constant 0 : i32
    %1 = arith.cmpi eq, %c2_i32, %c0_i32 : i32
    %c1_i32_0 = arith.constant 1 : i32
    %2 = arith.select %1, %c1_i32_0, %c2_i32 : i32
    %3 = arith.remsi %0, %2 : i32
    %c0_i32_1 = arith.constant 0 : i32
    %4 = arith.cmpi ne, %3, %c0_i32_1 : i32
    %c0_i32_2 = arith.constant 0 : i32
    %5 = arith.cmpi slt, %3, %c0_i32_2 : i32
    %c0_i32_3 = arith.constant 0 : i32
    %6 = arith.cmpi slt, %2, %c0_i32_3 : i32
    %7 = arith.xori %5, %6 : i1
    %8 = arith.andi %7, %4 : i1
    %9 = arith.addi %3, %2 : i32
    %10 = arith.select %8, %9, %3 : i32
    %c2_i32_4 = arith.constant 2 : i32
    %11 = arith.muli %10, %c2_i32_4 : i32
    %c0_i32_5 = arith.constant 0 : i32
    %c0_i32_6 = arith.constant 0 : i32
    return %11, %c0_i32_5 : i32, i32
  }
  func.func @transform_4(%arg0: i32) -> (i32, i32) {
    %c0_i32 = arith.constant 0 : i32
    %c0_i32_0 = arith.constant 0 : i32
    return %arg0, %c0_i32 : i32, i32
  }
}

</mosaic_0001>

<llo_original>
// kernel: tpu_custom_call.1
$region0: #{tpu_custom_call.1}
  #allocation0 [shape = 'u32[]', space=smem, size = 0x4, offset = 0x4, fixed_abs, tag = 'smem constant byte address 0x4 - core index']
  #allocation1 [shape = 'u32[72,128]{1,0:T(1,128)}', space=vmem, size = 0x9000, scoped, tag = 'internal scratch']
  %s0 = inlined_call_operand.hbm [shape: f32[3], index: 0, kind: input, shape index: {}]
  %s1 = inlined_call_operand.hbm [shape: f32[3], index: 1, kind: input, shape index: {}]
  %s2 = inlined_call_operand.hbm [shape: f32[32,128], index: 2, kind: input, shape index: {}]
  %s3 = inlined_call_operand.hbm [shape: f32[32,128], index: 3, kind: input, shape index: {}]
  %s4 = inlined_call_operand.hbm [shape: f32[32,128], index: 4, kind: output, shape index: {}]
  %s5 = sld [smem:[#allocation0]]
  $region65: #{tpu_custom_call.1} parent=0
    _
  %s7 = ssub.s32 1, %s5
  %s8 = scalar_select 0, %s7, %s5
  $region1: #{tpu_custom_call.1} parent=0
    #allocation2 [shape = 'u8[512]{0}', space=smem, size = 0x200, scoped, tag = 'input window, operand 0, single buffered']
    #allocation3 [shape = 's32[2]{0}', space=sflag, size = 0x8, scoped, tag = 'scoped memory for tpu_custom_call.1']
    #allocation4 [shape = 's32[2]{0}', space=sflag, size = 0x8, scoped, tag = 'scoped memory for tpu_custom_call.1']
    #allocation5 [shape = 's32[2]{0}', space=sflag, size = 0x8, scoped, tag = 'scoped memory for tpu_custom_call.1']
    #allocation6 [shape = 'u8[512]{0}', space=smem, size = 0x200, scoped, tag = 'input window, operand 1, single buffered']
    #allocation7 [shape = 's32[1]{0}', space=sflag, size = 0x4, scoped, tag = 'scoped memory for tpu_custom_call.1']
    #allocation8 [shape = 'u8[16384]{0}', space=vmem, size = 0x4000, scoped, tag = 'input window, operand 2']
    #allocation9 [shape = 'u8[8192]{0}', space=vmem, size = 0x2000, scoped, tag = 'input window, operand 3']
    #allocation10 [shape = 's32[2]{0}', space=sflag, size = 0x8, scoped, tag = 'scoped memory for tpu_custom_call.1']
    #allocation11 [shape = 'u8[16384]{0}', space=vmem, size = 0x4000, scoped, tag = 'output window, operand 0']
    %9 = vsyncpa [#allocation5], 0
    %10 = vsyncpa [#allocation7], 0
    %11 = vsyncpa [#allocation3], 0
    %s12 = scalar_lea.sflag [#allocation3], 1
    %13 = vsyncpa %s12, 0
    %14 = vsyncpa [#allocation10], 0
    %s15 = scalar_lea.sflag [#allocation10], 1
    %16 = vsyncpa %s15, 0
    %17 = vsyncpa [#allocation4], 0
    %s18 = scalar_lea.sflag [#allocation4], 1
    %19 = vsyncpa %s18, 0
    loop: start=0, step=1, limit=4
    $region2: #{tpu_custom_call.1} parent=1 // loop_pre_header
      _
    $region3: #{tpu_custom_call.1} parent=1 // loop_header
      %s21 = sphi 0, %s25
      %p22 = scmp.ge.s32.totalorder %s21, 4
      %s29 = sphi 0, %s29
      %s31 = sphi 0, %s29
      %s32 = sphi 0, %s31
      %s46 = sphi 0, %s32
      %s50 = sphi 0, %s50
      %s52 = sphi 0, %s50
      %s53 = sphi 0, %s52
      %s67 = sphi 0, %s53
      %s73 = sphi 0, %s75
      %s76 = sphi 0, %s73
      %s77 = sphi 0, %s76
      %s93 = sphi 0, %s77
      %s127 = sphi 0, %s129
      %s130 = sphi 0, %s127
      %s131 = sphi 0, %s130
      %s147 = sphi 0, %s131
      %s153 = sphi 0, %s155
      %s156 = sphi 0, %s153
      %s157 = sphi 0, %s156
      %s173 = sphi 0, %s157
    $region4: #{tpu_custom_call.1} parent=1 // loop_header_branch
      %24 = sbr.rel (%p22) target = $region8
    $region5: #{tpu_custom_call.1} parent=1 // loop_body
      %s26 = ssub.s32 %s21, 1
      %s27 = ssub.s32 %s21, 2
      %s28 = sadd.s32 %s21, 1
      %s30 = sadd.s32 %s29, 1
      %p33 = scmp.eq.s32.totalorder %s21, 1
      %p34 = scmp.ne.s32.totalorder %s29, %s31
      %p35 = scmp.eq.s32.totalorder %s21, 0
      %p36 = por %p34, %p35
      %p37 = scmp.ne.s32.totalorder %s29, %s31
      %p38 = scmp.eq.s32.totalorder %s26, 1
      %p39 = por %p37, %p38
      %p40 = scmp.ne.s32.totalorder %s31, %s32
      %p41 = scmp.eq.s32.totalorder %s26, 0
      %p42 = por %p40, %p41
      %p43 = scmp.ne.s32.totalorder %s31, %s32
      %p44 = scmp.eq.s32.totalorder %s27, 1
      %p45 = por %p43, %p44
      %p47 = scmp.ne.s32.totalorder %s32, %s46
      %p48 = scmp.eq.s32.totalorder %s27, 0
      %p49 = por %p47, %p48
      %s51 = sadd.s32 %s50, 1
      %p54 = scmp.eq.s32.totalorder %s21, 1
      %p55 = scmp.ne.s32.totalorder %s50, %s52
      %p56 = scmp.eq.s32.totalorder %s21, 0
      %p57 = por %p55, %p56
      %p58 = scmp.ne.s32.totalorder %s50, %s52
      %p59 = scmp.eq.s32.totalorder %s26, 1
      %p60 = por %p58, %p59
      %p61 = scmp.ne.s32.totalorder %s52, %s53
      %p62 = scmp.eq.s32.totalorder %s26, 0
      %p63 = por %p61, %p62
      %p64 = scmp.ne.s32.totalorder %s52, %s53
      %p65 = scmp.eq.s32.totalorder %s27, 1
      %p66 = por %p64, %p65
      %p68 = scmp.ne.s32.totalorder %s53, %s67
      %p69 = scmp.eq.s32.totalorder %s27, 0
      %p70 = por %p68, %p69
      %s71 = ssub.s32 %s21, %s28
      %p72 = scmp.eq.s32.totalorder %s71, 0
      %s74 = sadd.s32 %s73, 1
      %s75 = scalar_select %p72, %s73, %s74
      %p78 = pneg %p72
      %p79 = scmp.eq.s32.totalorder %s21, 1
      %p80 = por %p78, %p79
      %p81 = scmp.ne.s32.totalorder %s73, %s76
      %p82 = scmp.eq.s32.totalorder %s21, 0
      %p83 = por %p81, %p82
      %p84 = scmp.ne.s32.totalorder %s73, %s76
      %p85 = scmp.eq.s32.totalorder %s26, 1
      %p86 = por %p84, %p85
      %p87 = scmp.ne.s32.totalorder %s76, %s77
      %p88 = scmp.eq.s32.totalorder %s26, 0
      %p89 = por %p87, %p88
      %p90 = scmp.ne.s32.totalorder %s76, %s77
      %p91 = scmp.eq.s32.totalorder %s27, 1
      %p92 = por %p90, %p91
      %p94 = scmp.ne.s32.totalorder %s77, %s93
      %p95 = scmp.eq.s32.totalorder %s27, 0
      %p96 = por %p94, %p95
      %s97 = sadd.s32 %s21, 1
      %p98 = scmp.lt.s32.totalorder %s97, 0
      %s99 = ssub.s32 0, %s97
      %s100 = scalar_select %p98, %s99, %s97
      %s101 = sand.u32 %s100, 1
      %s102 = ssub.s32 0, %s101
      %s103 = scalar_select %p98, %s102, %s101
      %p104 = scmp.ne.s32.totalorder %s103, 0
      %p105 = scmp.lt.s32.totalorder %s103, 0
      %p106 = pnand %p105, %p104
      %p107 = pneg %p106
      %s108 = sadd.s32 %s103, 2
      %s109 = scalar_select %p107, %s108, %s103
      %s110 = smul.u32 %s109, 2
      %s111 = sadd.s32 %s28, 1
      %p112 = scmp.lt.s32.totalorder %s111, 0
      %s113 = ssub.s32 0, %s111
      %s114 = scalar_select %p112, %s113, %s111
      %s115 = sand.u32 %s114, 1
      %s116 = ssub.s32 0, %s115
      %s117 = scalar_select %p112, %s116, %s115
      %p118 = scmp.ne.s32.totalorder %s117, 0
      %p119 = scmp.lt.s32.totalorder %s117, 0
      %p120 = pnand %p119, %p118
      %p121 = pneg %p120
      %s122 = sadd.s32 %s117, 2
      %s123 = scalar_select %p121, %s122, %s117
      %s124 = smul.u32 %s123, 2
      %s125 = ssub.s32 %s110, %s124
      %p126 = scmp.eq.s32.totalorder %s125, 0
      %s128 = sadd.s32 %s127, 1
      %s129 = scalar_select %p126, %s127, %s128
      %p132 = pneg %p126
      %p133 = scmp.eq.s32.totalorder %s21, 1
      %p134 = por %p132, %p133
      %p135 = scmp.ne.s32.totalorder %s127, %s130
      %p136 = scmp.eq.s32.totalorder %s21, 0
      %p137 = por %p135, %p136
      %p138 = scmp.ne.s32.totalorder %s127, %s130
      %p139 = scmp.eq.s32.totalorder %s26, 1
      %p140 = por %p138, %p139
      %p141 = scmp.ne.s32.totalorder %s130, %s131
      %p142 = scmp.eq.s32.totalorder %s26, 0
      %p143 = por %p141, %p142
      %p144 = scmp.ne.s32.totalorder %s130, %s131
      %p145 = scmp.eq.s32.totalorder %s27, 1
      %p146 = por %p144, %p145
      %p148 = scmp.ne.s32.totalorder %s131, %s147
      %p149 = scmp.eq.s32.totalorder %s27, 0
      %p150 = por %p148, %p149
      %s151 = ssub.s32 %s21, %s28
      %p152 = scmp.eq.s32.totalorder %s151, 0
      %s154 = sadd.s32 %s153, 1
      %s155 = scalar_select %p152, %s153, %s154
      %p158 = pneg %p152
      %p159 = scmp.eq.s32.totalorder %s21, 1
      %p160 = por %p158, %p159
      %p161 = scmp.ne.s32.totalorder %s153, %s156
      %p162 = scmp.eq.s32.totalorder %s21, 0
      %p163 = por %p161, %p162
      %p164 = scmp.ne.s32.totalorder %s153, %s156
      %p165 = scmp.eq.s32.totalorder %s26, 1
      %p166 = por %p164, %p165
      %p167 = scmp.ne.s32.totalorder %s156, %s157
      %p168 = scmp.eq.s32.totalorder %s26, 0
      %p169 = por %p167, %p168
      %p170 = scmp.ne.s32.totalorder %s156, %s157
      %p171 = scmp.eq.s32.totalorder %s27, 1
      %p172 = por %p170, %p171
      %p174 = scmp.ne.s32.totalorder %s157, %s173
      %p175 = scmp.eq.s32.totalorder %s27, 0
      %p176 = por %p174, %p175
      %p177 = scmp.le.s32.totalorder 1, %s21
      %p178 = scmp.lt.s32.totalorder %s21, 3
      %p179 = pnand %p177, %p178
      %p180 = pneg %p179
      // Predicated region
      $region9: #{tpu_custom_call.1} parent=5 // pred_check
        _
      $region10: #{tpu_custom_call.1} parent=5 // pred_check_branch
        %182 = sbr.rel (%p179) target = $region12
      $region11: #{tpu_custom_call.1} parent=5 // pred_region
        %s183 = ssub.s32 %s21, 1
        // Predicated region
        $region13: #{tpu_custom_call.1} parent=11 // pred_check
          %p184 = pneg %p42
        $region14: #{tpu_custom_call.1} parent=11 // pred_check_branch
          %186 = sbr.rel (%p184) target = $region16
        $region15: #{tpu_custom_call.1} parent=11 // pred_region
          %188 = vsyncadd [#allocation5], 0
          %s190 = sshll.u32 %s0, 4
          %s191 = int_to_ptr.hbm [resolvable:$true] %s190
          %193 = dma.hbm_to_smem %s191, 16, [#allocation2], [#allocation5]
        $region16: #{tpu_custom_call.1} parent=11 // pred_fallthru
          _
        // Predicated region
        $region17: #{tpu_custom_call.1} parent=11 // pred_check
          %p194 = pneg %p63
        $region18: #{tpu_custom_call.1} parent=11 // pred_check_branch
          %196 = sbr.rel (%p194) target = $region20
        $region19: #{tpu_custom_call.1} parent=11 // pred_region
          %198 = vsyncadd [#allocation7], 0
          %s200 = sshll.u32 %s1, 4
          %s201 = int_to_ptr.hbm [resolvable:$true] %s200
          %203 = dma.hbm_to_smem %s201, 16, [#allocation6], [#allocation7]
        $region20: #{tpu_custom_call.1} parent=11 // pred_fallthru
          _
      $region12: #{tpu_custom_call.1} parent=5 // pred_fallthru
        _
      %p204 = scmp.lt.s32.totalorder %s21, 2
      // Predicated region
      $region21: #{tpu_custom_call.1} parent=5 // pred_check
        %p205 = pneg %p204
      $region22: #{tpu_custom_call.1} parent=5 // pred_check_branch
        %207 = sbr.rel (%p205) target = $region24
      $region23: #{tpu_custom_call.1} parent=5 // pred_region
        // Predicated region
        $region25: #{tpu_custom_call.1} parent=23 // pred_check
          %p208 = pneg %p83
        $region26: #{tpu_custom_call.1} parent=23 // pred_check_branch
          %210 = sbr.rel (%p208) target = $region28
        $region27: #{tpu_custom_call.1} parent=23 // pred_region
          %s211 = sand.u32 %s73, 1
          %s212 = scalar_lea.sflag [#allocation3], %s211
          %s213 = sand.u32 %s73, 1
          %s214 = smul.addr %s213, 16
          %s215 = scalar_lea.vmem [#allocation8], %s214
          %s216 = smul.u32 2, %s21
          %218 = vsyncadd %s212, 0
          %s219 = smul.addr %s216, 8
          %s220 = scalar_lea.hbm %s2, %s219
          %s221 = sshll.u32 %s220, 4
          %s222 = int_to_ptr.hbm [resolvable:$true] %s221
          %s223 = sshll.u32 %s215, 4
          %s224 = int_to_ptr.vmem [resolvable:$true] %s223
          %229 = dma.hbm_to_vmem [thread:$0]  %s222, 256, %s224, %s212, 128, 128, 8
        $region28: #{tpu_custom_call.1} parent=23 // pred_fallthru
          _
        // Predicated region
        $region29: #{tpu_custom_call.1} parent=23 // pred_check
          %p230 = pneg %p137
        $region30: #{tpu_custom_call.1} parent=23 // pred_check_branch
          %232 = sbr.rel (%p230) target = $region32
        $region31: #{tpu_custom_call.1} parent=23 // pred_region
          %s233 = sand.u32 %s127, 1
          %s234 = scalar_lea.sflag [#allocation10], %s233
          %s235 = sand.u32 %s127, 1
          %s236 = smul.addr %s235, 8
          %s237 = scalar_lea.vmem [#allocation9], %s236
          %s238 = sadd.s32 %s21, 1
          %p239 = scmp.lt.s32.totalorder %s238, 0
          %s240 = ssub.s32 0, %s238
          %s241 = scalar_select %p239, %s240, %s238
          %s242 = sand.u32 %s241, 1
          %s243 = ssub.s32 0, %s242
          %s244 = scalar_select %p239, %s243, %s242
          %p245 = scmp.ne.s32.totalorder %s244, 0
          %p246 = scmp.lt.s32.totalorder %s244, 0
          %p247 = pnand %p246, %p245
          %p248 = pneg %p247
          %s249 = sadd.s32 %s244, 2
          %s250 = scalar_select %p248, %s249, %s244
          %s251 = smul.u32 %s250, 2
          %253 = vsyncadd %s234, 0
          %s254 = smul.addr %s251, 8
          %s255 = scalar_lea.hbm %s3, %s254
          %s257 = sshll.u32 %s255, 4
          %s258 = int_to_ptr.hbm [resolvable:$true] %s257
          %s259 = sshll.u32 %s237, 4
          %s260 = int_to_ptr.vmem [resolvable:$true] %s259
          %262 = dma.hbm_to_vmem [thread:$0]  %s258, 128, %s260, %s234
        $region32: #{tpu_custom_call.1} parent=23 // pred_fallthru
          _
      $region24: #{tpu_custom_call.1} parent=5 // pred_fallthru
        _
      %p263 = scmp.le.s32.totalorder 1, %s21
      %p264 = scmp.lt.s32.totalorder %s21, 3
      %p265 = pnand %p263, %p264
      %p266 = pneg %p265
      // Predicated region
      $region33: #{tpu_custom_call.1} parent=5 // pred_check
        _
      $region34: #{tpu_custom_call.1} parent=5 // pred_check_branch
        %268 = sbr.rel (%p265) target = $region36
      $region35: #{tpu_custom_call.1} parent=5 // pred_region
        %s269 = ssub.s32 %s21, 1
        // Predicated region
        $region37: #{tpu_custom_call.1} parent=35 // pred_check
          %p270 = pneg %p42
        $region38: #{tpu_custom_call.1} parent=35 // pred_check_branch
          %272 = sbr.rel (%p270) target = $region40
        $region39: #{tpu_custom_call.1} parent=35 // pred_region
          %274 = dma.done [#allocation5], 16
        $region40: #{tpu_custom_call.1} parent=35 // pred_fallthru
          _
        // Predicated region
        $region41: #{tpu_custom_call.1} parent=35 // pred_check
          %p275 = pneg %p63
        $region42: #{tpu_custom_call.1} parent=35 // pred_check_branch
          %277 = sbr.rel (%p275) target = $region44
        $region43: #{tpu_custom_call.1} parent=35 // pred_region
          %279 = dma.done [#allocation7], 16
        $region44: #{tpu_custom_call.1} parent=35 // pred_fallthru
          _
        %s280 = sand.u32 %s76, 1
        %s281 = scalar_lea.sflag [#allocation3], %s280
        %s282 = sand.u32 %s76, 1
        %s283 = smul.addr %s282, 16
        %s284 = scalar_lea.vmem [#allocation8], %s283
        // Predicated region
        $region45: #{tpu_custom_call.1} parent=35 // pred_check
          %p285 = pneg %p89
        $region46: #{tpu_custom_call.1} parent=35 // pred_check_branch
          %287 = sbr.rel (%p285) target = $region48
        $region47: #{tpu_custom_call.1} parent=35 // pred_region
          %289 = dma.done %s281, 256
        $region48: #{tpu_custom_call.1} parent=35 // pred_fallthru
          _
        %s290 = sand.u32 %s130, 1
        %s291 = scalar_lea.sflag [#allocation10], %s290
        %s292 = sand.u32 %s130, 1
        %s293 = smul.addr %s292, 8
        %s294 = scalar_lea.vmem [#allocation9], %s293
        // Predicated region
        $region49: #{tpu_custom_call.1} parent=35 // pred_check
          %p295 = pneg %p143
        $region50: #{tpu_custom_call.1} parent=35 // pred_check_branch
          %297 = sbr.rel (%p295) target = $region52
        $region51: #{tpu_custom_call.1} parent=35 // pred_region
          %299 = dma.done %s291, 128
        $region52: #{tpu_custom_call.1} parent=35 // pred_fallthru
          _
        %300 = sfence
        %p301 = pneg %p42
        %p302 = pneg %p39
        %p303 = pneg %p63
        %p304 = pneg %p60
        %s305 = sand.u32 %s76, 1
        %s306 = scalar_lea.sflag [#allocation3], %s305
        %s307 = sand.u32 %s76, 1
        %s308 = smul.addr %s307, 16
        %s309 = scalar_lea.vmem [#allocation8], %s308
        %p310 = pneg %p89
        %p311 = pneg %p86
        %s312 = sand.u32 %s130, 1
        %s313 = scalar_lea.sflag [#allocation10], %s312
        %s314 = sand.u32 %s130, 1
        %s315 = smul.addr %s314, 8
        %s316 = scalar_lea.vmem [#allocation9], %s315
        %p317 = pneg %p143
        %p318 = pneg %p140
        %p319 = pneg %p169
        %p320 = pneg %p166
        %s321 = sand.u32 %s156, 1
        %s322 = scalar_lea.sflag [#allocation4], %s321
        %s323 = sand.u32 %s156, 1
        %s324 = smul.addr %s323, 16
        %s325 = scalar_lea.vmem [#allocation11], %s324
        %s326 = smul.u32 2, %s26
        %s327 = sadd.s32 %s26, 1
        %p328 = scmp.lt.s32.totalorder %s327, 0
        %s329 = ssub.s32 0, %s327
        %s330 = scalar_select %p328, %s329, %s327
        %s331 = sand.u32 %s330, 1
        %s332 = ssub.s32 0, %s331
        %s333 = scalar_select %p328, %s332, %s331
        %p334 = scmp.ne.s32.totalorder %s333, 0
        %p335 = scmp.lt.s32.totalorder %s333, 0
        %p336 = pnand %p335, %p334
        %p337 = pneg %p336
        %s338 = sadd.s32 %s333, 2
        %s339 = scalar_select %p337, %s338, %s333
        %s340 = smul.u32 %s339, 2
        %s341 = smul.u32 2, %s26
        %s342 = smul.u32 %s26, 2048
        %v343 = vlaneseq
        %v344 = vshrl.u32 %v343, 7
        %v345 = vadd.s32 %v344, 8
        %v346 = vadd.s32 %v344, 16
        %v347 = vlaneseq
        %v348 = vand.u32 %v347, 127
        %v349 = vmul.u32 %v344, 128
        %v350 = vmul.u32 %v345, 128
        %v351 = vmul.u32 %v346, 128
        %v352 = vadd.s32 %v349, %v348
        %v353 = vadd.s32 %v350, %v348
        %v354 = vadd.s32 %v351, %v348
        %vm355 = vcmp.eq.s32.totalorder %v348, 127
        %v356 = vld [vmem:[%s284] sm:$0xff]
        %v357 = vld [vmem:[%s284 + $0x8] sm:$0xff]
        %v358 = vld [vmem:[%s294] sm:$0xff]
        %v359 = vstv %s342
        %v360 = vadd.s32 %v359, %v352
        %v361 = vadd.s32 %v359, %v353
        %v362 = vadd.s32 %v359, %v354
        %vm363 = vcmp.ge.s32.totalorder %v360, 4096
        %vm364 = vcmp.ge.s32.totalorder %v361, 4096
        %vm365 = vcmp.ge.s32.totalorder %v362, 4096
        %v366 = vsub.s32 %v360, 4096
        %v367 = vsub.s32 %v361, 4096
        %v368 = vsub.s32 %v362, 4096
        %v369 = vsel %vm363, %v366, %v360
        %v370 = vsel %vm364, %v367, %v361
        %v371 = vsel %vm365, %v368, %v362
        %v372 = vcvt.s32.f32 %v369
        %v373 = vcvt.s32.f32 %v370
        %v374 = vcvt.s32.f32 %v371
        %v375 = vmul.f32 %v372, 0.00024420026
        %v376 = vmul.f32 %v373, 0.00024420026
        %v377 = vmul.f32 %v374, 0.00024420026
        %v378 = vadd.f32 %v375, 1.0
        %v379 = vadd.f32 %v376, 1.0
        %v380 = vadd.f32 %v377, 1.0
        %384 = vrot.lane.b32.xlu0 %v356, 127
        %v385 = vpop.permute.xlu0 %384
        %386 = vrot.lane.b32.xlu0 %v357, 127
        %v387 = vpop.permute.xlu0 %386
        %388 = vrot.lane.b32.xlu0 %v358, 127
        %v389 = vpop.permute.xlu0 %388
        %vm396 = vcmask 1046528
        %v397 = vrot.slane %v385, 1
        %v398 = vrot.slane %v387, 1
        %v399 = vsel %vm396, %v397, %v398
        %v400 = vrot.slane %v389, 1
        %v401 = vsel %vm396, %v398, %v400
        %v406 = vsel %vm396, %v400, %v397
        %v407 = vsel %vm355, %v399, %v385
        %v408 = vsel %vm355, %v401, %v387
        %v409 = vsel %vm355, %v406, %v389
        %s410 = sld [smem:[#allocation2]]
        %v411 = vstv %s410
        %v412 = vmul.f32 %v411, %v356
        %v413 = vmul.f32 %v411, %v357
        %v414 = vmul.f32 %v411, %v358
        %s415 = sld [smem:[#allocation6]]
        %v416 = vsub.f32 %v356, %v407
        %v417 = vsub.f32 %v357, %v408
        %v418 = vsub.f32 %v358, %v409
        %v419 = vstv %s415
        %v420 = vmul.f32 %v419, %v416
        %v421 = vmul.f32 %v419, %v417
        %v422 = vmul.f32 %v419, %v418
        %v423 = vadd.f32 %v412, %v420
        %v424 = vadd.f32 %v413, %v421
        %v425 = vadd.f32 %v414, %v422
        %v426 = vmul.f32 %v378, %v423
        %v427 = vmul.f32 %v379, %v424
        %v428 = vmul.f32 %v380, %v425
        %432 = vrot.lane.b32.xlu0 %v426, 127
        %v433 = vpop.permute.xlu0 %432
        %434 = vrot.lane.b32.xlu0 %v427, 127
        %v435 = vpop.permute.xlu0 %434
        %436 = vrot.lane.b32.xlu0 %v428, 127
        %v437 = vpop.permute.xlu0 %436
        %v444 = vrot.slane %v433, 1
        %v445 = vrot.slane %v435, 1
        %v446 = vsel %vm396, %v444, %v445
        %v447 = vrot.slane %v437, 1
        %v448 = vsel %vm396, %v445, %v447
        %v453 = vsel %vm396, %v447, %v444
        %v454 = vsel %vm355, %v446, %v433
        %v455 = vsel %vm355, %v448, %v435
        %v456 = vsel %vm355, %v453, %v437
        %s457 = sld [smem:[#allocation2 + $0x1]]
        %v458 = vstv %s457
        %v459 = vmul.f32 %v458, %v426
        %v460 = vmul.f32 %v458, %v427
        %v461 = vmul.f32 %v458, %v428
        %s462 = sld [smem:[#allocation6 + $0x1]]
        %v463 = vsub.f32 %v407, %v454
        %v464 = vsub.f32 %v408, %v455
        %v465 = vsub.f32 %v409, %v456
        %v466 = vstv %s462
        %v467 = vmul.f32 %v466, %v463
        %v468 = vmul.f32 %v466, %v464
        %v469 = vmul.f32 %v466, %v465
        %v470 = vadd.f32 %v459, %v467
        %v471 = vadd.f32 %v460, %v468
        %v472 = vadd.f32 %v461, %v469
        %v473 = vmul.f32 %v378, %v470
        %v474 = vmul.f32 %v379, %v471
        %v475 = vmul.f32 %v380, %v472
        %479 = vrot.lane.b32.xlu0 %v407, 127
        %v480 = vpop.permute.xlu0 %479
        %481 = vrot.lane.b32.xlu0 %v408, 127
        %v482 = vpop.permute.xlu0 %481
        %483 = vrot.lane.b32.xlu0 %v409, 127
        %v484 = vpop.permute.xlu0 %483
        %v491 = vrot.slane %v480, 1
        %v492 = vrot.slane %v482, 1
        %v493 = vsel %vm396, %v491, %v492
        %v494 = vrot.slane %v484, 1
        %v495 = vsel %vm396, %v492, %v494
        %v498 = vsel %vm355, %v493, %v480
        %v499 = vsel %vm355, %v495, %v482
        %503 = vrot.lane.b32.xlu0 %v473, 127
        %v504 = vpop.permute.xlu0 %503
        %505 = vrot.lane.b32.xlu0 %v474, 127
        %v506 = vpop.permute.xlu0 %505
        %507 = vrot.lane.b32.xlu0 %v475, 127
        %v508 = vpop.permute.xlu0 %507
        %v515 = vrot.slane %v504, 1
        %v516 = vrot.slane %v506, 1
        %v517 = vsel %vm396, %v515, %v516
        %v518 = vrot.slane %v508, 1
        %v519 = vsel %vm396, %v516, %v518
        %v522 = vsel %vm355, %v517, %v504
        %v523 = vsel %vm355, %v519, %v506
        %s524 = sld [smem:[#allocation2 + $0x2]]
        %v525 = vstv %s524
        %v526 = vmul.f32 %v525, %v473
        %v527 = vmul.f32 %v525, %v474
        %s528 = sld [smem:[#allocation6 + $0x2]]
        %v529 = vsub.f32 %v498, %v522
        %v530 = vsub.f32 %v499, %v523
        %v531 = vstv %s528
        %v532 = vmul.f32 %v531, %v529
        %v533 = vmul.f32 %v531, %v530
        %v534 = vadd.f32 %v526, %v532
        %v535 = vadd.f32 %v527, %v533
        %v536 = vmul.f32 %v378, %v534
        %v537 = vmul.f32 %v379, %v535
        %538 = vst [vmem:[%s325] sm:$0xff] %v536
        %539 = vst [vmem:[%s325 + $0x8] sm:$0xff] %v537
        %s540 = sand.u32 %s156, 1
        %s541 = scalar_lea.sflag [#allocation4], %s540
        %s542 = sand.u32 %s156, 1
        %s543 = smul.addr %s542, 16
        %s544 = scalar_lea.vmem [#allocation11], %s543
        // Predicated region
        $region53: #{tpu_custom_call.1} parent=35 // pred_check
          %p545 = pneg %p166
        $region54: #{tpu_custom_call.1} parent=35 // pred_check_branch
          %547 = sbr.rel (%p545) target = $region56
        $region55: #{tpu_custom_call.1} parent=35 // pred_region
          %s548 = smul.u32 2, %s26
          %550 = vsyncadd %s541, 0
          %s551 = smul.addr %s548, 8
          %s552 = scalar_lea.hbm %s4, %s551
          %s553 = sshll.u32 %s544, 4
          %s554 = int_to_ptr.vmem [resolvable:$true] %s553
          %s555 = sshll.u32 %s552, 4
          %s556 = int_to_ptr.hbm [resolvable:$true] %s555
          %561 = dma.vmem_to_hbm [thread:$0]  %s554, 256, %s556, %s541, 128, 128, 8
        $region56: #{tpu_custom_call.1} parent=35 // pred_fallthru
          _
      $region36: #{tpu_custom_call.1} parent=5 // pred_fallthru
        _
      %p562 = scmp.le.s32.totalorder 2, %s21
      // Predicated region
      $region57: #{tpu_custom_call.1} parent=5 // pred_check
        %p563 = pneg %p562
      $region58: #{tpu_custom_call.1} parent=5 // pred_check_branch
        %565 = sbr.rel (%p563) target = $region60
      $region59: #{tpu_custom_call.1} parent=5 // pred_region
        %s566 = ssub.s32 %s21, 2
        // Predicated region
        $region61: #{tpu_custom_call.1} parent=59 // pred_check
          %p567 = pneg %p172
        $region62: #{tpu_custom_call.1} parent=59 // pred_check_branch
          %569 = sbr.rel (%p567) target = $region64
        $region63: #{tpu_custom_call.1} parent=59 // pred_region
          %s570 = sand.u32 %s157, 1
          %s571 = scalar_lea.sflag [#allocation4], %s570
          %s572 = sand.u32 %s157, 1
          %s573 = smul.addr %s572, 16
          %s574 = scalar_lea.vmem [#allocation11], %s573
          %576 = dma.done %s571, 256
        $region64: #{tpu_custom_call.1} parent=59 // pred_fallthru
          _
      $region60: #{tpu_custom_call.1} parent=5 // pred_fallthru
        _
    $region6: #{tpu_custom_call.1} parent=1 // loop_footer
      %s25 = sadd.s32 1, %s21
    $region7: #{tpu_custom_call.1} parent=1 // loop_footer_branch
      %20 = sbr.rel target = $region3
    $region8: #{tpu_custom_call.1} parent=1 // loop_exit
      _
    %577 = vsyncpa [#allocation3], 1
    %s578 = scalar_lea.sflag [#allocation3], 1
    %579 = vsyncpa %s578, 1
    %580 = vsyncpa [#allocation10], 1
    %s581 = scalar_lea.sflag [#allocation10], 1
    %582 = vsyncpa %s581, 1
    %583 = vsyncpa [#allocation4], 1
    %s584 = scalar_lea.sflag [#allocation4], 1
    %585 = vsyncpa %s584, 1
    %586 = vsyncpa [#allocation5], 1
    %s587 = scalar_lea.sflag [#allocation5], 1
    %588 = vsyncpa %s587, 1
    %589 = vsyncpa [#allocation7], 1

</llo_original>
